<compile_context>
chip_gen: v5e
topology: v5e:2x2
jax: 0.10.0
libtpu: 0.0.40
codegen_flags: <defaults>
</compile_context>

<pallas_src>
import numpy as np
from numpy import sin, cos, tan, pi, arcsin, arctan
from functools import lru_cache

import jax
import jax.numpy as jnp
from jax.experimental import pallas as pl
from jax.experimental.pallas import tpu as pltpu


# ----------------------------------------------------------------------------------
# Spherical sampling-pattern math (host-side numpy, identical to the PyTorch module)
# ----------------------------------------------------------------------------------
@lru_cache(None)
def get_xy(delta_phi, delta_theta):
    return np.array([
        [(-tan(delta_theta), 1 / cos(delta_theta) * tan(delta_phi)),
         (0, tan(delta_phi)),
         (tan(delta_theta), 1 / cos(delta_theta) * tan(delta_phi))],
        [(-tan(delta_theta), 0), (1, 1), (tan(delta_theta), 0)],
        [(-tan(delta_theta), -1 / cos(delta_theta) * tan(delta_phi)),
         (0, -tan(delta_phi)),
         (tan(delta_theta), -1 / cos(delta_theta) * tan(delta_phi))],
    ])


@lru_cache(None)
def cal_index(h, w, img_r, img_c):
    phi = -((img_r + 0.5) / h * pi - pi / 2)
    theta = (img_c + 0.5) / w * 2 * pi - pi
    delta_phi = pi / h
    delta_theta = 2 * pi / w
    xys = get_xy(delta_phi, delta_theta)
    x = xys[..., 0]
    y = xys[..., 1]
    with np.errstate(divide="ignore", invalid="ignore"):
        rho = np.sqrt(x ** 2 + y ** 2)
        v = arctan(rho)
        new_phi = arcsin(cos(v) * sin(phi) + y * sin(v) * cos(phi) / rho)
        new_theta = theta + arctan(
            x * sin(v) / (rho * cos(phi) * cos(v) - y * sin(phi) * sin(v)))
    new_r = (-new_phi + pi / 2) * h / pi - 0.5
    new_c = (new_theta + pi) * w / 2 / pi - 0.5
    new_c = (new_c + w) % w
    new_result = np.stack([new_r, new_c], axis=-1)
    new_result[1, 1] = (img_r, img_c)
    return new_result


@lru_cache(None)
def _gen_filters_coordinates(h, w, stride):
    co = np.array([[cal_index(h, w, i, j) for j in range(0, w, stride)]
                   for i in range(0, h, stride)])
    return np.ascontiguousarray(co.transpose([4, 0, 1, 2, 3]))


def gen_filters_coordinates(h, w, stride=1):
    assert isinstance(h, int) and isinstance(w, int)
    return _gen_filters_coordinates(h, w, stride).copy()


def gen_grid_coordinates(h, w, stride=1):
    coordinates = gen_filters_coordinates(h, w, stride).copy()
    coordinates[0] = coordinates[0] * 2 / h - 1
    coordinates[1] = coordinates[1] * 2 / w - 1
    coordinates = coordinates[::-1]
    coordinates = coordinates.transpose(1, 3, 2, 4, 0)
    sz = coordinates.shape
    coordinates = coordinates.reshape(1, sz[0] * sz[1], sz[2] * sz[3], sz[4])
    return coordinates.copy()


def _precompute_bilinear_flat(h, w, stride=1):
    """grid_sample(bilinear, align_corners=False, padding_mode='zeros') decomposed into
    4 gather indices + 4 weights per (output pixel, tap).  Returns:
      idx: (S, 4, 9) int32 flat indices into H*W   (corner q, tap kk=kr*3+kc)
      wts: (S, 4, 9) float32 bilinear weights      (same ordering)
    with S = Hp*Wp output pixels."""
    grid = gen_grid_coordinates(h, w, stride)[0]          # (3Hp, 3Wp, 2), (x, y) order
    hp = grid.shape[0] // 3
    wp = grid.shape[1] // 3
    gx = grid[..., 0]
    gy = grid[..., 1]
    ix = ((gx + 1.0) * w - 1.0) * 0.5
    iy = ((gy + 1.0) * h - 1.0) * 0.5
    x0 = np.floor(ix)
    y0 = np.floor(iy)
    idxs, wts = [], []
    for dy, dx in ((0, 0), (0, 1), (1, 0), (1, 1)):
        xc = x0 + dx
        yc = y0 + dy
        wq = (1.0 - np.abs(ix - xc)) * (1.0 - np.abs(iy - yc))
        valid = (xc >= 0) & (xc <= w - 1) & (yc >= 0) & (yc <= h - 1)
        wq = np.where(valid, wq, 0.0)                      # zero padding outside
        xi = np.clip(xc, 0, w - 1).astype(np.int32)
        yi = np.clip(yc, 0, h - 1).astype(np.int32)
        fl = (yi * w + xi).reshape(hp, 3, wp, 3).transpose(0, 2, 1, 3).reshape(hp * wp, 9)
        ww = wq.reshape(hp, 3, wp, 3).transpose(0, 2, 1, 3).reshape(hp * wp, 9)
        idxs.append(fl)
        wts.append(ww)
    idx = np.stack(idxs, axis=1).astype(np.int32)          # (S, 4, 9)
    w_ = np.stack(wts, axis=1).astype(np.float32)          # (S, 4, 9)
    return idx, w_, hp, wp


def _round_up(a, b):
    return ((a + b - 1) // b) * b


# ----------------------------------------------------------------------------------
# Pallas kernel: one MXU contraction over K = C*9 plus an f32 bias add.
# ----------------------------------------------------------------------------------
def _sphere_conv_kernel(s_ref, w_ref, b_ref, o_ref):
    # s_ref: (1, K, tile_m)  bf16  pre-weighted, corner-reduced samples (K in sublanes, pixels in lanes)
    # w_ref: (out_pad, K)    bf16  conv weights (resident)
    # b_ref: (out_pad, 1)    f32   bias (resident)
    # o_ref: (1, out_pad, tile_m) f32 output (lane-dense)
    acc = jnp.dot(w_ref[...], s_ref[0], preferred_element_type=jnp.float32)   # (out_pad, tile_m)
    o_ref[0] = acc + b_ref[...]                                               # f32 bias add + store


def sphere_conv2d_pallas(x, weight, bias, stride=1, tile_m=1024):
    """x: (B, in_c, H, W) NCHW float32; weight: (out_c, in_c, 3, 3); bias: (out_c,)."""
    B, C, H, W = x.shape
    out_c = weight.shape[0]
    idx, wts, Hp, Wp = _precompute_bilinear_flat(H, W, stride)     # (S, 4, 9) each
    S = Hp * Wp
    K = C * 9                                                      # (c, tap) ordering
    out_pad = _round_up(out_c, 8)                                  # small writeback for small out_c

    # --- tile sizing: lane-dense pixel tile, biggest that fits the per-chip VMEM budget -----
    tile_m = max(128, (int(tile_m) // 128) * 128)
    tile_m = min(tile_m, _round_up(S, 128))

    try:
        vmem_cap = int(pltpu.get_tpu_info().vmem_capacity_bytes)
    except Exception:
        vmem_cap = 64 * 1024 * 1024                                # v7x-safe fallback
    vmem_budget = int(vmem_cap * 0.70)

    def _vmem_est(tm):
        samp = 2 * _round_up(K, 16) * tm * 2                       # bf16 stream, double-buffered
        outb = 2 * out_pad * tm * 4                                # f32 output tile, double-buffered
        wres = 2 * _round_up(out_pad, 16) * _round_up(K, 128) * 2  # resident conv weights
        bres = 2 * out_pad * 128 * 4                               # resident bias
        return samp + outb + wres + bres

    while tile_m > 128 and _vmem_est(tile_m) > vmem_budget:
        tile_m = max(128, ((tile_m // 2) // 128) * 128)
    S_pad = _round_up(S, tile_m)
    n_tiles = S_pad // tile_m

    # --- host-side gather: bilinear weights folded in, 4 corners pre-reduced ----------------
    # TODO(synk): move this gather into the kernel pipeline (pl.ANY + band DMA) to remove the 9x blow-up.
    x_flat = x.reshape(B, C, H * W).astype(jnp.float32)
    gathered = jnp.take(x_flat, jnp.asarray(idx.reshape(-1), dtype=jnp.int32), axis=2)
    gathered = gathered.reshape(B, C, S, 4, 9)
    sampled = (gathered * jnp.asarray(wts)[None, None]).sum(axis=3)            # (B, C, S, 9) f32
    sampled = jnp.transpose(sampled, (0, 1, 3, 2)).reshape(B, K, S)            # (B, C*9, S), c outer / tap inner
    if S_pad != S:
        sampled = jnp.pad(sampled, ((0, 0), (0, 0), (0, S_pad - S)))
    sampled = sampled.astype(jnp.bfloat16)                                     # halve the dominant stream

    # Conv weight as (out_pad, C*9) bf16; rows beyond out_c are zero and sliced off after the call.
    w_np = np.asarray(weight, dtype=np.float32).reshape(out_c, K)              # (out_c, C*9), c outer / (kr,kc) inner
    Wm = np.zeros((out_pad, K), np.float32)
    Wm[:out_c] = w_np
    bm = np.zeros((out_pad, 1), np.float32)
    bm[:out_c, 0] = np.asarray(bias, dtype=np.float32)
    Wm = jnp.asarray(Wm, dtype=jnp.bfloat16)
    bm = jnp.asarray(bm)

    bytes_accessed = int(B * S_pad * K * 2                     # bf16 sample stream
                         + B * S_pad * out_pad * 4             # f32 output writeback
                         + Wm.size * 2 + bm.size * 4)          # resident weights/bias (fetched once)
    cost = pl.CostEstimate(flops=int(2 * B * S_pad * K * out_pad),
                           transcendentals=0,
                           bytes_accessed=bytes_accessed)
    vmem_limit = int(min(vmem_cap, max(32 * 1024 * 1024, 2 * _vmem_est(tile_m))))

    out = pl.pallas_call(
        _sphere_conv_kernel,
        out_shape=jax.ShapeDtypeStruct((B, out_pad, S_pad), jnp.float32),
        grid_spec=pltpu.PrefetchScalarGridSpec(
            num_scalar_prefetch=0,
            grid=(B, n_tiles),
            in_specs=[
                pl.BlockSpec((1, K, tile_m), lambda b, i: (b, 0, i)),      # sample stream (per batch)
                pl.BlockSpec((out_pad, K), lambda b, i: (0, 0)),           # conv weights (resident)
                pl.BlockSpec((out_pad, 1), lambda b, i: (0, 0)),           # bias (resident)
            ],
            out_specs=pl.BlockSpec((1, out_pad, tile_m), lambda b, i: (b, 0, i)),
        ),
        compiler_params=pltpu.CompilerParams(
            dimension_semantics=("parallel", "parallel"),
            vmem_limit_bytes=vmem_limit),
        cost_estimate=cost,
    )(sampled, Wm, bm)

    # (B, out_pad, S_pad) -> (B, out_c, Hp, Wp): already NCHW, just slice + reshape.
    return out[:, :out_c, :S].reshape(B, out_c, Hp, Wp)


# ----------------------------------------------------------------------------------
# Independent plain-JAX reference (grid_sample + lax.conv) for verification
# ----------------------------------------------------------------------------------
def _reference_forward(x, weight, bias, stride=1):
    B, C, H, W = x.shape
    grid = jnp.asarray(gen_grid_coordinates(H, W, stride)[0], dtype=jnp.float32)  # (3Hp,3Wp,2)
    gx, gy = grid[..., 0], grid[..., 1]
    ix = ((gx + 1.0) * W - 1.0) * 0.5
    iy = ((gy + 1.0) * H - 1.0) * 0.5
    x0 = jnp.floor(ix)
    y0 = jnp.floor(iy)
    x_flat = x.reshape(B, C, H * W)

    def corner(yc, xc):
        wq = (1.0 - jnp.abs(ix - xc)) * (1.0 - jnp.abs(iy - yc))
        valid = (xc >= 0) & (xc <= W - 1) & (yc >= 0) & (yc <= H - 1)
        wq = jnp.where(valid, wq, 0.0)
        xi = jnp.clip(xc, 0, W - 1).astype(jnp.int32)
        yi = jnp.clip(yc, 0, H - 1).astype(jnp.int32)
        flat = (yi * W + xi).reshape(1, 1, -1)
        flat = jnp.broadcast_to(flat, (B, C, flat.shape[-1]))
        vals = jnp.take_along_axis(x_flat, flat, axis=2).reshape(B, C, *ix.shape)
        return vals * wq[None, None]

    sampled = (corner(y0, x0) + corner(y0, x0 + 1)
               + corner(y0 + 1, x0) + corner(y0 + 1, x0 + 1))      # (B, C, 3Hp, 3Wp)
    out = jax.lax.conv_general_dilated(
        sampled, weight, window_strides=(3, 3), padding="VALID",
        dimension_numbers=("NCHW", "OIHW", "NCHW"))
    return out + bias[None, :, None, None]


# ----------------------------------------------------------------------------------
if __name__ == "__main__":
    B, in_c, out_c, H, W = 2, 4, 8, 16, 16
    key = jax.random.PRNGKey(0)
    kx, kw = jax.random.split(key)

    x = jax.random.normal(kx, (B, in_c, H, W), dtype=jnp.float32)
    # kaiming_uniform_(a=sqrt(5)) -> U(-1/sqrt(fan_in), 1/sqrt(fan_in)); bias zeroed.
    fan_in = in_c * 9
    bound = 1.0 / np.sqrt(fan_in)
    weight = jax.random.uniform(kw, (out_c, in_c, 3, 3), jnp.float32, -bound, bound)
    bias = jnp.zeros((out_c,), jnp.float32)

    out = sphere_conv2d_pallas(x, weight, bias, stride=1)
    out = jax.block_until_ready(out)
    assert out.shape == (B, out_c, H, W), out.shape

    ref = jax.block_until_ready(_reference_forward(x, weight, bias, stride=1))
    # bf16 streaming (f32 accumulation) -> slightly looser tolerance than the pure-f32 path.
    np.testing.assert_allclose(np.asarray(out), np.asarray(ref), rtol=2e-2, atol=2e-2)

    print("KERNEL_OK")
</pallas_src>

<mosaic_0001>
module attributes {stable_mosaic.version = 11 : i64} {
  func.func @_sphere_conv_kernel(%arg0: i32, %arg1: i32, %arg2: memref<1x36x256xbf16, #tpu.memory_space<vmem>>, %arg3: memref<8x36xbf16, #tpu.memory_space<vmem>>, %arg4: memref<8x1xf32, #tpu.memory_space<vmem>>, %arg5: memref<1x8x256xf32, #tpu.memory_space<vmem>>) attributes {dimension_semantics = [#tpu.dimension_semantics<parallel>, #tpu.dimension_semantics<parallel>], iteration_bounds = array<i64: 2, 1>, scalar_prefetch = 0 : i64, scratch_operands = 0 : i64, tpu.core_type = #tpu.core_type<tc>, window_params = [{transform_indices = @transform_0, window_bounds = array<i64: 1, 36, 256>}, {pipeline_mode = #tpu.pipeline_mode<synchronous>, transform_indices = @transform_1, window_bounds = array<i64: 8, 36>}, {pipeline_mode = #tpu.pipeline_mode<synchronous>, transform_indices = @transform_2, window_bounds = array<i64: 8, 1>}, {transform_indices = @transform_3, window_bounds = array<i64: 1, 8, 256>}]} {
    %c0 = arith.constant 0 : index
    %c0_0 = arith.constant 0 : index
    %0 = vector.load %arg3[%c0, %c0_0] : memref<8x36xbf16, #tpu.memory_space<vmem>>, vector<8x36xbf16>
    %c0_1 = arith.constant 0 : index
    %c0_2 = arith.constant 0 : index
    %c0_3 = arith.constant 0 : index
    %1 = vector.load %arg2[%c0_1, %c0_2, %c0_3] : memref<1x36x256xbf16, #tpu.memory_space<vmem>>, vector<1x36x256xbf16>
    %2 = vector.shape_cast %1 : vector<1x36x256xbf16> to vector<36x256xbf16>
    %cst = arith.constant dense<0.000000e+00> : vector<8x256xf32>
    %3 = tpu.matmul %0, %2, %cst {dimension_numbers = #tpu.dot_dimension_numbers<[1], [0], [0], [1], [0, 0, 1, 1], [], []>} : vector<8x36xbf16>, vector<36x256xbf16>, vector<8x256xf32> -> vector<8x256xf32>
    %c0_4 = arith.constant 0 : index
    %c0_5 = arith.constant 0 : index
    %4 = vector.load %arg4[%c0_4, %c0_5] : memref<8x1xf32, #tpu.memory_space<vmem>>, vector<8x1xf32>
    %5 = vector.broadcast %4 : vector<8x1xf32> to vector<8x256xf32>
    %6 = arith.addf %3, %5 : vector<8x256xf32>
    %c0_6 = arith.constant 0 : index
    %c0_7 = arith.constant 0 : index
    %c0_8 = arith.constant 0 : index
    %7 = vector.load %arg5[%c0_6, %c0_7, %c0_8] : memref<1x8x256xf32, #tpu.memory_space<vmem>>, vector<1x8x256xf32>
    %8 = vector.shape_cast %7 : vector<1x8x256xf32> to vector<8x256xf32>
    %9 = vector.shape_cast %6 : vector<8x256xf32> to vector<1x8x256xf32>
    tpu.vector_store %arg5[%c0_6, %c0_7, %c0_8], %9 {strides = array<i32>} : memref<1x8x256xf32, #tpu.memory_space<vmem>>, vector<1x8x256xf32>,
    return
  }
  func.func @transform_0(%arg0: i32, %arg1: i32) -> (i32, i32, i32) {
    %c0_i32 = arith.constant 0 : i32
    %c0_i32_0 = arith.constant 0 : i32
    return %arg0, %c0_i32, %arg1 : i32, i32, i32
  }
  func.func @transform_1(%arg0: i32, %arg1: i32) -> (i32, i32) {
    %c0_i32 = arith.constant 0 : i32
    %c0_i32_0 = arith.constant 0 : i32
    %c0_i32_1 = arith.constant 0 : i32
    return %c0_i32, %c0_i32_0 : i32, i32
  }
  func.func @transform_2(%arg0: i32, %arg1: i32) -> (i32, i32) {
    %c0_i32 = arith.constant 0 : i32
    %c0_i32_0 = arith.constant 0 : i32
    %c0_i32_1 = arith.constant 0 : i32
    return %c0_i32, %c0_i32_0 : i32, i32
  }
  func.func @transform_3(%arg0: i32, %arg1: i32) -> (i32, i32, i32) {
    %c0_i32 = arith.constant 0 : i32
    %c0_i32_0 = arith.constant 0 : i32
    return %arg0, %c0_i32, %arg1 : i32, i32, i32
  }
}

</mosaic_0001>

<llo_original>
// kernel: tpu_custom_call.1
$region0: #{tpu_custom_call.1}
  #allocation0 [shape = 'u32[]', space=smem, size = 0x4, offset = 0x4, fixed_abs, tag = 'smem constant byte address 0x4 - core index']
  #allocation1 [shape = 'u32[72,128]{1,0:T(1,128)}', space=vmem, size = 0x9000, scoped, tag = 'internal scratch']
  %s0 = inlined_call_operand.vmem [shape: bf16[2,36,256], index: 0, kind: input, shape index: {}]
  %s1 = inlined_call_operand.vmem [shape: bf16[8,36], index: 1, kind: input, shape index: {}]
  %s2 = inlined_call_operand.vmem [shape: f32[8,1], index: 2, kind: input, shape index: {}]
  %s3 = inlined_call_operand.hbm [shape: f32[2,8,256], index: 3, kind: output, shape index: {}]
  %s4 = sld [smem:[#allocation0]]
  $region45: #{tpu_custom_call.1} parent=0
    _
  %s6 = ssub.s32 1, %s4
  %s7 = scalar_select 0, %s6, %s4
  $region1: #{tpu_custom_call.1} parent=0
    #allocation2 [shape = 'u8[16384]{0}', space=vmem, size = 0x4000, scoped, tag = 'output window, operand 0']
    #allocation3 [shape = 's32[2]{0}', space=sflag, size = 0x8, scoped, tag = 'scoped memory for tpu_custom_call.1']
    %8 = vsyncpa [#allocation3], 0
    %s9 = scalar_lea.sflag [#allocation3], 1
    %10 = vsyncpa %s9, 0
    loop: start=0, step=1, limit=4
    $region2: #{tpu_custom_call.1} parent=1 // loop_pre_header
      _
    $region3: #{tpu_custom_call.1} parent=1 // loop_header
      %s12 = sphi 0, %s16
      %p13 = scmp.ge.s32.totalorder %s12, 4
      %s19 = sphi 0, %s31
      %s20 = sphi 0, %s27
      %s21 = sphi 0, %s19
      %s22 = sphi 0, %s20
      %s23 = sphi 0, %s21
      %s24 = sphi 0, %s22
      %s36 = sphi 0, %s38
      %s39 = sphi 0, %s36
      %s40 = sphi 0, %s39
      %s56 = sphi 0, %s40
      %s60 = sphi 0, %s60
      %s62 = sphi 0, %s60
      %s63 = sphi 0, %s62
      %s77 = sphi 0, %s63
      %s81 = sphi 0, %s81
      %s83 = sphi 0, %s81
      %s84 = sphi 0, %s83
      %s98 = sphi 0, %s84
      %s106 = sphi 0, %s108
      %s109 = sphi 0, %s106
      %s110 = sphi 0, %s109
      %s126 = sphi 0, %s110
    $region4: #{tpu_custom_call.1} parent=1 // loop_header_branch
      %15 = sbr.rel (%p13) target = $region8
    $region5: #{tpu_custom_call.1} parent=1 // loop_body
      %s17 = ssub.s32 %s12, 1
      %s18 = ssub.s32 %s12, 2
      %s25 = sadd.s32 1, %s20
      %p26 = scmp.ge.s32.totalorder %s25, 1
      %s27 = scalar_select %p26, 0, %s25
      %s28 = sadd.s32 1, %s19
      %s29 = scalar_select %p26, %s28, %s19
      %p30 = scmp.ge.s32.totalorder %s29, 2
      %s31 = scalar_select %p30, 0, %s29
      %s32 = ssub.s32 %s19, %s31
      %s33 = ssub.s32 %s20, %s27
      %s34 = sor.u32 %s32, %s33
      %p35 = scmp.eq.s32.totalorder %s34, 0
      %s37 = sadd.s32 %s36, 1
      %s38 = scalar_select %p35, %s36, %s37
      %p41 = pneg %p35
      %p42 = scmp.eq.s32.totalorder %s12, 1
      %p43 = por %p41, %p42
      %p44 = scmp.ne.s32.totalorder %s36, %s39
      %p45 = scmp.eq.s32.totalorder %s12, 0
      %p46 = por %p44, %p45
      %p47 = scmp.ne.s32.totalorder %s36, %s39
      %p48 = scmp.eq.s32.totalorder %s17, 1
      %p49 = por %p47, %p48
      %p50 = scmp.ne.s32.totalorder %s39, %s40
      %p51 = scmp.eq.s32.totalorder %s17, 0
      %p52 = por %p50, %p51
      %p53 = scmp.ne.s32.totalorder %s39, %s40
      %p54 = scmp.eq.s32.totalorder %s18, 1
      %p55 = por %p53, %p54
      %p57 = scmp.ne.s32.totalorder %s40, %s56
      %p58 = scmp.eq.s32.totalorder %s18, 0
      %p59 = por %p57, %p58
      %s61 = sadd.s32 %s60, 1
      %p64 = scmp.eq.s32.totalorder %s12, 1
      %p65 = scmp.ne.s32.totalorder %s60, %s62
      %p66 = scmp.eq.s32.totalorder %s12, 0
      %p67 = por %p65, %p66
      %p68 = scmp.ne.s32.totalorder %s60, %s62
      %p69 = scmp.eq.s32.totalorder %s17, 1
      %p70 = por %p68, %p69
      %p71 = scmp.ne.s32.totalorder %s62, %s63
      %p72 = scmp.eq.s32.totalorder %s17, 0
      %p73 = por %p71, %p72
      %p74 = scmp.ne.s32.totalorder %s62, %s63
      %p75 = scmp.eq.s32.totalorder %s18, 1
      %p76 = por %p74, %p75
      %p78 = scmp.ne.s32.totalorder %s63, %s77
      %p79 = scmp.eq.s32.totalorder %s18, 0
      %p80 = por %p78, %p79
      %s82 = sadd.s32 %s81, 1
      %p85 = scmp.eq.s32.totalorder %s12, 1
      %p86 = scmp.ne.s32.totalorder %s81, %s83
      %p87 = scmp.eq.s32.totalorder %s12, 0
      %p88 = por %p86, %p87
      %p89 = scmp.ne.s32.totalorder %s81, %s83
      %p90 = scmp.eq.s32.totalorder %s17, 1
      %p91 = por %p89, %p90
      %p92 = scmp.ne.s32.totalorder %s83, %s84
      %p93 = scmp.eq.s32.totalorder %s17, 0
      %p94 = por %p92, %p93
      %p95 = scmp.ne.s32.totalorder %s83, %s84
      %p96 = scmp.eq.s32.totalorder %s18, 1
      %p97 = por %p95, %p96
      %p99 = scmp.ne.s32.totalorder %s84, %s98
      %p100 = scmp.eq.s32.totalorder %s18, 0
      %p101 = por %p99, %p100
      %s102 = ssub.s32 %s19, %s31
      %s103 = ssub.s32 %s20, %s27
      %s104 = sor.u32 %s102, %s103
      %p105 = scmp.eq.s32.totalorder %s104, 0
      %s107 = sadd.s32 %s106, 1
      %s108 = scalar_select %p105, %s106, %s107
      %p111 = pneg %p105
      %p112 = scmp.eq.s32.totalorder %s12, 1
      %p113 = por %p111, %p112
      %p114 = scmp.ne.s32.totalorder %s106, %s109
      %p115 = scmp.eq.s32.totalorder %s12, 0
      %p116 = por %p114, %p115
      %p117 = scmp.ne.s32.totalorder %s106, %s109
      %p118 = scmp.eq.s32.totalorder %s17, 1
      %p119 = por %p117, %p118
      %p120 = scmp.ne.s32.totalorder %s109, %s110
      %p121 = scmp.eq.s32.totalorder %s17, 0
      %p122 = por %p120, %p121
      %p123 = scmp.ne.s32.totalorder %s109, %s110
      %p124 = scmp.eq.s32.totalorder %s18, 1
      %p125 = por %p123, %p124
      %p127 = scmp.ne.s32.totalorder %s110, %s126
      %p128 = scmp.eq.s32.totalorder %s18, 0
      %p129 = por %p127, %p128
      %p130 = scmp.le.s32.totalorder 1, %s12
      %p131 = scmp.lt.s32.totalorder %s12, 3
      %p132 = pnand %p130, %p131
      %p133 = pneg %p132
      // Predicated region
      $region9: #{tpu_custom_call.1} parent=5 // pred_check
        _
      $region10: #{tpu_custom_call.1} parent=5 // pred_check_branch
        %135 = sbr.rel (%p132) target = $region12
      $region11: #{tpu_custom_call.1} parent=5 // pred_region
        %s136 = ssub.s32 %s12, 1
        // Predicated region
        $region13: #{tpu_custom_call.1} parent=11 // pred_check
          %p137 = pneg %p73
        $region14: #{tpu_custom_call.1} parent=11 // pred_check_branch
          %139 = sbr.rel (%p137) target = $region16
        $region15: #{tpu_custom_call.1} parent=11 // pred_region
          _
        $region16: #{tpu_custom_call.1} parent=11 // pred_fallthru
          _
        // Predicated region
        $region17: #{tpu_custom_call.1} parent=11 // pred_check
          %p140 = pneg %p94
        $region18: #{tpu_custom_call.1} parent=11 // pred_check_branch
          %142 = sbr.rel (%p140) target = $region20
        $region19: #{tpu_custom_call.1} parent=11 // pred_region
          _
        $region20: #{tpu_custom_call.1} parent=11 // pred_fallthru
          _
      $region12: #{tpu_custom_call.1} parent=5 // pred_fallthru
        _
      %p143 = scmp.lt.s32.totalorder %s12, 2
      // Predicated region
      $region21: #{tpu_custom_call.1} parent=5 // pred_check
        %p144 = pneg %p143
      $region22: #{tpu_custom_call.1} parent=5 // pred_check_branch
        %146 = sbr.rel (%p144) target = $region24
      $region23: #{tpu_custom_call.1} parent=5 // pred_region
        // Predicated region
        $region25: #{tpu_custom_call.1} parent=23 // pred_check
          %p147 = pneg %p46
        $region26: #{tpu_custom_call.1} parent=23 // pred_check_branch
          %149 = sbr.rel (%p147) target = $region28
        $region27: #{tpu_custom_call.1} parent=23 // pred_region
          %s150 = smul.u32 2, %s20
          %p151 = scmp.lt.s32.totalorder %s19, 1
          %s152 = scalar_select %p151, %s19, 1
          %p153 = scmp.lt.s32.totalorder %s150, 1
          %s154 = scalar_select %p153, %s150, 1
          %s155 = smul.addr %s152, 10
          %s156 = sadd.s32 %s154, %s155
          %s157 = smul.addr %s156, 4
          %s158 = scalar_lea.vmem %s0, %s157
          %s159 = smul.u32 2, %s20
        $region28: #{tpu_custom_call.1} parent=23 // pred_fallthru
          _
      $region24: #{tpu_custom_call.1} parent=5 // pred_fallthru
        _
      %p160 = scmp.le.s32.totalorder 1, %s12
      %p161 = scmp.lt.s32.totalorder %s12, 3
      %p162 = pnand %p160, %p161
      %p163 = pneg %p162
      // Predicated region
      $region29: #{tpu_custom_call.1} parent=5 // pred_check
        _
      $region30: #{tpu_custom_call.1} parent=5 // pred_check_branch
        %165 = sbr.rel (%p162) target = $region32
      $region31: #{tpu_custom_call.1} parent=5 // pred_region
        %s166 = ssub.s32 %s12, 1
        %s167 = smul.u32 2, %s22
        %p168 = scmp.lt.s32.totalorder %s21, 1
        %s169 = scalar_select %p168, %s21, 1
        %p170 = scmp.lt.s32.totalorder %s167, 1
        %s171 = scalar_select %p170, %s167, 1
        %s172 = smul.addr %s169, 10
        %s173 = sadd.s32 %s171, %s172
        %s174 = smul.addr %s173, 4
        %s175 = scalar_lea.vmem %s0, %s174
        %p176 = pneg %p52
        %p177 = pneg %p49
        %p178 = pneg %p73
        %p179 = pneg %p70
        %p180 = pneg %p94
        %p181 = pneg %p91
        %p182 = pneg %p122
        %p183 = pneg %p119
        %s184 = sand.u32 %s109, 1
        %s185 = scalar_lea.sflag [#allocation3], %s184
        %s186 = sand.u32 %s109, 1
        %s187 = smul.addr %s186, 16
        %s188 = scalar_lea.vmem [#allocation2], %s187
        %s189 = smul.u32 2, %s22
        %p190 = scmp.lt.s32.totalorder %s21, 1
        %s191 = scalar_select %p190, %s21, 1
        %p192 = scmp.lt.s32.totalorder %s189, 1
        %s193 = scalar_select %p192, %s189, 1
        %s194 = smul.addr %s191, 10
        %s195 = sadd.s32 %s193, %s194
        %s196 = smul.addr %s195, 4
        %s197 = scalar_lea.vmem %s0, %s196
        %s198 = smul.u32 2, %s22
        %s199 = smul.u32 2, %s22
        %v201 = vld [vmem:[%s1] sm:$0xf]
        %v202 = vld [vmem:[%s197] sm:$0xff]
        %v203 = vld [vmem:[%s197 + $0x8] sm:$0xff]
        %v204 = vld [vmem:[%s197 + $0x10] sm:$0xff]
        %v205 = vld [vmem:[%s197 + $0x18] sm:$0xff]
        %v206 = vld [vmem:[%s197 + $0x20] sm:$0x33]
        %v207 = vld [vmem:[%s2] sm:$0xff]
        %209 = vset.pattern.permute.xlu0 0
        %210 = vperm.xlu0 %209, %v207
        %v211 = vpop.permute.xlu0 %210
        %v218 = vunpack.c.l.b16 %v202
        %v219 = vunpack.c.h.b16 %v202
        %v220 = vunpack.c.l.b16 %v203
        %v221 = vunpack.c.h.b16 %v203
        %v222 = vunpack.c.l.b16 %v204
        %v223 = vunpack.c.h.b16 %v204
        %v224 = vunpack.c.l.b16 %v205
        %v225 = vunpack.c.h.b16 %v205
        %v226 = vunpack.c.l.b16 %v206
        %v227 = vunpack.c.h.b16 %v206
        %v228 = vpack.c.b16 %v220, %v218
        %v229 = vpack.c.b16 %v221, %v219
        %v230 = vpack.c.b16 %v224, %v222
        %v231 = vpack.c.b16 %v225, %v223
        %v232 = vpack.c.b16 %v226, %v226
        %v233 = vpack.c.b16 %v227, %v227
        %vm238 = vcmask 293888
        %v240 = vsel %vm238, %v201, 0
        %vm242 = vcmask 1041408
        %v244 = vsel %vm242, %v232, 0
        %v247 = vsel %vm242, %v233, 0
        %249 = vmatpush.bf16.msra.mxu0 0
        %250 = vmatpush.bf16.msra.mxu0 0
        %251 = vmatpush.bf16.msra.mxu0 0
        %252 = vmatpush.bf16.msra.mxu0 0
        %253 = vmatpush.bf16.msra.mxu0 0
        %254 = vmatpush.bf16.msra.mxu0 %v244
        %255 = vmatpush.bf16.msra.mxu0 %v230
        %256 = vmatpush.bf16.msra.mxu0 %v228
        %257 = vmatmul.bf16.gmra.mxu0 %v240
        %v258 = vpop.f32.mrf.mxu0
        %v259 = vadd.f32 %v211, %v258
        %v260 = vpop.f32.mrf.mxu0
        %261 = vdwg.mxu0
        %262 = vmatpush.bf16.msra.mxu0 0
        %263 = vmatpush.bf16.msra.mxu0 0
        %264 = vmatpush.bf16.msra.mxu0 0
        %265 = vmatpush.bf16.msra.mxu0 0
        %266 = vmatpush.bf16.msra.mxu0 0
        %267 = vmatpush.bf16.msra.mxu0 %v247
        %268 = vmatpush.bf16.msra.mxu0 %v231
        %269 = vmatpush.bf16.msra.mxu0 %v229
        %270 = vmatmul.bf16.gmra.mxu0 %v240
        %v271 = vpop.f32.mrf.mxu0
        %v272 = vadd.f32 %v211, %v271
        %v273 = vpop.f32.mrf.mxu0
        %274 = vdwg.mxu0
        %275 = vst [vmem:[%s188] sm:$0xff] %v259
        %276 = vst [vmem:[%s188 + $0x8] sm:$0xff] %v272
        %s277 = sand.u32 %s109, 1
        %s278 = scalar_lea.sflag [#allocation3], %s277
        %s279 = sand.u32 %s109, 1
        %s280 = smul.addr %s279, 16
        %s281 = scalar_lea.vmem [#allocation2], %s280
        // Predicated region
        $region33: #{tpu_custom_call.1} parent=31 // pred_check
          %p282 = pneg %p119
        $region34: #{tpu_custom_call.1} parent=31 // pred_check_branch
          %284 = sbr.rel (%p282) target = $region36
        $region35: #{tpu_custom_call.1} parent=31 // pred_region
          %s285 = smul.u32 2, %s22
          %287 = vsyncadd %s278, 0
          %s288 = smul.addr %s21, 2
          %s289 = sadd.s32 %s285, %s288
          %s290 = smul.addr %s289, 8
          %s291 = scalar_lea.hbm %s3, %s290
          %s293 = sshll.u32 %s281, 4
          %s294 = int_to_ptr.vmem [resolvable:$true] %s293
          %s295 = sshll.u32 %s291, 4
          %s296 = int_to_ptr.hbm [resolvable:$true] %s295
          %298 = dma.vmem_to_hbm [thread:$0]  %s294, 256, %s296, %s278
        $region36: #{tpu_custom_call.1} parent=31 // pred_fallthru
          _
      $region32: #{tpu_custom_call.1} parent=5 // pred_fallthru
        _
      %p299 = scmp.le.s32.totalorder 2, %s12
      // Predicated region
      $region37: #{tpu_custom_call.1} parent=5 // pred_check
        %p300 = pneg %p299
      $region38: #{tpu_custom_call.1} parent=5 // pred_check_branch
        %302 = sbr.rel (%p300) target = $region40
      $region39: #{tpu_custom_call.1} parent=5 // pred_region
        %s303 = ssub.s32 %s12, 2
        // Predicated region
        $region41: #{tpu_custom_call.1} parent=39 // pred_check
          %p304 = pneg %p125
        $region42: #{tpu_custom_call.1} parent=39 // pred_check_branch
          %306 = sbr.rel (%p304) target = $region44
        $region43: #{tpu_custom_call.1} parent=39 // pred_region
          %s307 = sand.u32 %s110, 1
          %s308 = scalar_lea.sflag [#allocation3], %s307
          %s309 = sand.u32 %s110, 1
          %s310 = smul.addr %s309, 16
          %s311 = scalar_lea.vmem [#allocation2], %s310
          %313 = dma.done %s308, 256
        $region44: #{tpu_custom_call.1} parent=39 // pred_fallthru
          _
      $region40: #{tpu_custom_call.1} parent=5 // pred_fallthru
        _
    $region6: #{tpu_custom_call.1} parent=1 // loop_footer
      %s16 = sadd.s32 1, %s12
    $region7: #{tpu_custom_call.1} parent=1 // loop_footer_branch
      %11 = sbr.rel target = $region3
    $region8: #{tpu_custom_call.1} parent=1 // loop_exit
      _
    %314 = vsyncpa [#allocation3], 1
    %s315 = scalar_lea.sflag [#allocation3], 1
    %316 = vsyncpa %s315, 1

</llo_original>
